<compile_context>
chip_gen: v6e
topology: v6e:2x2x1
jax: 0.10.0
libtpu: 0.0.40
codegen_flags: <defaults>
</compile_context>

<pallas_src>
import functools

import jax
import jax.numpy as jnp
from jax.experimental import pallas as pl
from jax.experimental.pallas import tpu as pltpu

NUM_LAYERS = 16   # gc1 .. gc16
F_PAD = 128       # lane-dense feature width (pads nfeat/nhid/nclass)


def _gcn16_kernel(x_ref, adj_ref, w_ref, b_ref, out_ref, h_ref, *, nfeat):
    """One grid step == one GCN layer.

    x_ref   : (N, nfeat)      f32, resident (constant index_map), read at l==0
    adj_ref : (N, N)          f32, resident for all 16 layers
    w_ref   : (F_PAD, F_PAD)  bf16, this layer's weight (layer dim squeezed)
    b_ref   : (1, F_PAD)      f32, this layer's bias (layer dim squeezed)
    out_ref : (N, F_PAD)      f32, lane-dense padded output (written at l==15)
    h_ref   : (N, F_PAD)      f32 VMEM scratch, running activation across layers
    """
    l = pl.program_id(0)

    @pl.when(l == 0)
    def _init():
        # Zero-extend the input features to the lane-dense width.  Padded
        # columns stay exactly zero through every layer (padded weight
        # rows/cols and bias entries are zero; relu preserves zero).
        h_ref[...] = jnp.zeros_like(h_ref)
        h_ref[:, :nfeat] = x_ref[...]

    h = h_ref[...]                                   # f32 running activation
    # support = h @ W   -> bf16 MXU operands, f32 accumulation
    support = jnp.dot(h.astype(jnp.bfloat16), w_ref[...],
                      preferred_element_type=jnp.float32)
    # out = adj @ support + b   (adj kept f32: exact row-normalized values)
    out = jnp.dot(adj_ref[...], support,
                  preferred_element_type=jnp.float32) + b_ref[...]

    # gc1..gc15 feed relu(out) forward; the value written after gc16 is never
    # read again, so the unconditional relu here is harmless.
    h_ref[...] = jnp.maximum(out, 0.0)
    # dropout is identity in eval mode (see TODO at top of file).

    @pl.when(l == NUM_LAYERS - 1)
    def _finalize():
        out_ref[...] = out.astype(out_ref.dtype)     # gc16: no relu


@jax.jit
def gcn_layer_16_forward(x, adj, w_stack, b_stack):
    """Fused 16-layer GCN forward.

    Returns the lane-dense padded (N, F_PAD) activations of gc16; the real
    logits are the first `nclass` columns (padded columns are exactly zero).
    """
    n, nfeat = x.shape
    f_pad = w_stack.shape[-1]

    flops = NUM_LAYERS * (2 * n * f_pad * f_pad + 2 * n * n * f_pad)
    bytes_accessed = (x.size * 4 + adj.size * 4 + w_stack.size * 2
                      + b_stack.size * 4 + n * f_pad * 4)

    # Explicit scoped-VMEM budget from the real working set (+ headroom),
    # instead of relying on per-generation defaults (16/32/32 MiB).
    vmem_limit = int(
        2 * n * n * 4              # adj (resident, headroom for buffering)
        + 2 * n * nfeat * 4        # x
        + 3 * f_pad * f_pad * 2    # per-layer bf16 weight slab (multi-buffered)
        + 3 * f_pad * 4            # per-layer bias
        + n * f_pad * 4            # h scratch
        + 2 * n * f_pad * 4        # padded output
        + (4 << 20)                # compiler-internal scratch headroom
    )

    kernel = functools.partial(_gcn16_kernel, nfeat=nfeat)
    return pl.pallas_call(
        kernel,
        out_shape=jax.ShapeDtypeStruct((n, f_pad), jnp.float32),
        grid_spec=pltpu.PrefetchScalarGridSpec(
            num_scalar_prefetch=0,
            grid=(NUM_LAYERS,),
            in_specs=[
                pl.BlockSpec((n, nfeat), lambda l: (0, 0)),               # x
                pl.BlockSpec((n, n), lambda l: (0, 0)),                   # adj
                pl.BlockSpec((None, f_pad, f_pad), lambda l: (l, 0, 0)),  # W_l
                pl.BlockSpec((None, 1, f_pad), lambda l: (l, 0, 0)),      # b_l
            ],
            out_specs=pl.BlockSpec((n, f_pad), lambda l: (0, 0)),
            scratch_shapes=[pltpu.VMEM((n, f_pad), jnp.float32)],
        ),
        compiler_params=pltpu.CompilerParams(
            dimension_semantics=("arbitrary",),   # layer l+1 depends on layer l
            vmem_limit_bytes=vmem_limit,
        ),
        cost_estimate=pl.CostEstimate(
            flops=flops, transcendentals=0, bytes_accessed=bytes_accessed
        ),
    )(x, adj, w_stack, b_stack)


def init_params(key, nfeat, nhid, nclass):
    """Deterministic init mimicking pygcn's uniform(-stdv, stdv)."""
    dims = [(nfeat, nhid)] + [(nhid, nhid)] * (NUM_LAYERS - 2) + [(nhid, nclass)]
    params = []
    for i, (fin, fout) in enumerate(dims):
        kw, kb = jax.random.split(jax.random.fold_in(key, i))
        stdv = 1.0 / (fout ** 0.5)
        w = jax.random.uniform(kw, (fin, fout), jnp.float32, -stdv, stdv)
        b = jax.random.uniform(kb, (fout,), jnp.float32, -stdv, stdv)
        params.append((w, b))
    return params


def pack_params(params, f_pad=F_PAD):
    """Zero-pad and stack per-layer (W, b); weights stored bf16 for MXU/DMA."""
    w_stack = jnp.zeros((NUM_LAYERS, f_pad, f_pad), jnp.float32)
    b_stack = jnp.zeros((NUM_LAYERS, 1, f_pad), jnp.float32)
    for l, (w, b) in enumerate(params):
        fin, fout = w.shape
        w_stack = w_stack.at[l, :fin, :fout].set(w)
        b_stack = b_stack.at[l, 0, :fout].set(b)
    return w_stack.astype(jnp.bfloat16), b_stack


def _reference_f32(x, adj, params):
    """Pure-JAX f32 reference of GCN_layer_16.forward in eval mode."""
    h = x
    for i, (w, b) in enumerate(params):
        out = adj @ (h @ w) + b[None, :]
        h = out if i == len(params) - 1 else jnp.maximum(out, 0.0)
    return h


def _reference_bf16(x, adj, params):
    """Reference applying the kernel's bf16 casts on the h @ W operands."""
    h = x
    for i, (w, b) in enumerate(params):
        support = jnp.dot(h.astype(jnp.bfloat16), w.astype(jnp.bfloat16),
                          preferred_element_type=jnp.float32)
        out = jnp.dot(adj, support, preferred_element_type=jnp.float32) + b[None, :]
        h = out if i == len(params) - 1 else jnp.maximum(out, 0.0)
    return h


if __name__ == "__main__":
    key = jax.random.PRNGKey(0)
    k_x, k_adj, k_p = jax.random.split(key, 3)

    N, NFEAT, NHID, NCLASS = 16, 16, 32, 8

    x = jax.random.normal(k_x, (N, NFEAT), jnp.float32)
    # Symmetric, row-normalized dense adjacency with self-loops.
    a = (jax.random.uniform(k_adj, (N, N)) > 0.7).astype(jnp.float32)
    a = jnp.maximum(a, a.T) + jnp.eye(N, dtype=jnp.float32)
    adj = a / jnp.sum(a, axis=1, keepdims=True)

    params = init_params(k_p, NFEAT, NHID, NCLASS)
    w_stack, b_stack = pack_params(params)

    out_pad = gcn_layer_16_forward(x, adj, w_stack, b_stack)
    jax.block_until_ready(out_pad)
    out = out_pad[:, :NCLASS]            # real logits

    ref_bf16 = _reference_bf16(x, adj, params)
    ref_f32 = _reference_f32(x, adj, params)

    assert out.shape == (N, NCLASS)
    # Padded output columns must be exactly zero (zero-padded W/b, relu).
    assert bool(jnp.all(out_pad[:, NCLASS:] == 0.0))
    # Tight-ish check vs a reference using the same bf16 MXU-operand casts.
    assert jnp.allclose(out, ref_bf16, atol=2e-2, rtol=2e-2)
    # Loose check vs the full-f32 reference (bf16 weight quantization only).
    assert jnp.allclose(out, ref_f32, atol=6e-2, rtol=6e-2)

    print("KERNEL_OK")
</pallas_src>

<mosaic_0001>
module attributes {stable_mosaic.version = 11 : i64} {
  func.func @_gcn16_kernel(%arg0: i32, %arg1: memref<16x16xf32, #tpu.memory_space<vmem>>, %arg2: memref<16x16xf32, #tpu.memory_space<vmem>>, %arg3: memref<1x128x128xbf16, #tpu.memory_space<vmem>>, %arg4: memref<1x1x128xf32, #tpu.memory_space<vmem>>, %arg5: memref<16x128xf32, #tpu.memory_space<vmem>>, %arg6: memref<16x128xf32, #tpu.memory_space<vmem>>) attributes {dimension_semantics = [#tpu.dimension_semantics<arbitrary>], iteration_bounds = array<i64: 16>, scalar_prefetch = 0 : i64, scratch_operands = 1 : i64, tpu.core_type = #tpu.core_type<tc>, window_params = [{pipeline_mode = #tpu.pipeline_mode<synchronous>, transform_indices = @transform_0, window_bounds = array<i64: 16, 16>}, {pipeline_mode = #tpu.pipeline_mode<synchronous>, transform_indices = @transform_1, window_bounds = array<i64: 16, 16>}, {transform_indices = @transform_2, window_bounds = array<i64: 1, 128, 128>}, {transform_indices = @transform_3, window_bounds = array<i64: 1, 1, 128>}, {pipeline_mode = #tpu.pipeline_mode<synchronous>, transform_indices = @transform_4, window_bounds = array<i64: 16, 128>}]} {
    %c0_i32 = arith.constant 0 : i32
    %0 = arith.cmpi eq, %arg0, %c0_i32 : i32
    %1 = arith.extui %0 : i1 to i32
    %c0_i32_0 = arith.constant 0 : i32
    %2 = arith.cmpi ne, %1, %c0_i32_0 : i32
    scf.if %2 {
      %cst_15 = arith.constant 0.000000e+00 : f32
      %20 = vector.broadcast %cst_15 : f32 to vector<16x128xf32>
      %c0_16 = arith.constant 0 : index
      %c0_17 = arith.constant 0 : index
      %21 = vector.load %arg6[%c0_16, %c0_17] : memref<16x128xf32, #tpu.memory_space<vmem>>, vector<16x128xf32>
      tpu.vector_store %arg6[%c0_16, %c0_17], %20 {strides = array<i32>} : memref<16x128xf32, #tpu.memory_space<vmem>>, vector<16x128xf32>,
      %c0_18 = arith.constant 0 : index
      %c0_19 = arith.constant 0 : index
      %22 = vector.load %arg1[%c0_18, %c0_19] : memref<16x16xf32, #tpu.memory_space<vmem>>, vector<16x16xf32>
      %c0_20 = arith.constant 0 : index
      %c0_21 = arith.constant 0 : index
      %23 = vector.load %arg6[%c0_20, %c0_21] : memref<16x128xf32, #tpu.memory_space<vmem>>, vector<16x16xf32>
      tpu.vector_store %arg6[%c0_20, %c0_21], %22 {strides = array<i32>} : memref<16x128xf32, #tpu.memory_space<vmem>>, vector<16x16xf32>,
    } else {
    }
    %c0 = arith.constant 0 : index
    %c0_1 = arith.constant 0 : index
    %3 = vector.load %arg6[%c0, %c0_1] : memref<16x128xf32, #tpu.memory_space<vmem>>, vector<16x128xf32>
    %4 = arith.truncf %3 : vector<16x128xf32> to vector<16x128xbf16>
    %c0_2 = arith.constant 0 : index
    %c0_3 = arith.constant 0 : index
    %c0_4 = arith.constant 0 : index
    %5 = vector.load %arg3[%c0_2, %c0_3, %c0_4] : memref<1x128x128xbf16, #tpu.memory_space<vmem>>, vector<1x128x128xbf16>
    %6 = vector.shape_cast %5 : vector<1x128x128xbf16> to vector<128x128xbf16>
    %cst = arith.constant dense<0.000000e+00> : vector<16x128xf32>
    %7 = tpu.matmul %4, %6, %cst {dimension_numbers = #tpu.dot_dimension_numbers<[1], [0], [0], [1], [0, 0, 1, 1], [], []>} : vector<16x128xbf16>, vector<128x128xbf16>, vector<16x128xf32> -> vector<16x128xf32>
    %c0_5 = arith.constant 0 : index
    %c0_6 = arith.constant 0 : index
    %8 = vector.load %arg2[%c0_5, %c0_6] : memref<16x16xf32, #tpu.memory_space<vmem>>, vector<16x16xf32>
    %cst_7 = arith.constant dense<0.000000e+00> : vector<16x128xf32>
    %9 = tpu.matmul %8, %7, %cst_7 {dimension_numbers = #tpu.dot_dimension_numbers<[1], [0], [0], [1], [0, 0, 1, 1], [], []>} : vector<16x16xf32>, vector<16x128xf32>, vector<16x128xf32> -> vector<16x128xf32>
    %c0_8 = arith.constant 0 : index
    %c0_9 = arith.constant 0 : index
    %c0_10 = arith.constant 0 : index
    %10 = vector.load %arg4[%c0_8, %c0_9, %c0_10] : memref<1x1x128xf32, #tpu.memory_space<vmem>>, vector<1x1x128xf32>
    %11 = vector.shape_cast %10 : vector<1x1x128xf32> to vector<1x128xf32>
    %12 = vector.broadcast %11 : vector<1x128xf32> to vector<16x128xf32>
    %13 = arith.addf %9, %12 : vector<16x128xf32>
    %cst_11 = arith.constant 0.000000e+00 : f32
    %14 = vector.broadcast %cst_11 : f32 to vector<16x128xf32>
    %15 = arith.maximumf %13, %14 : vector<16x128xf32>
    %c0_12 = arith.constant 0 : index
    %c0_13 = arith.constant 0 : index
    %16 = vector.load %arg6[%c0_12, %c0_13] : memref<16x128xf32, #tpu.memory_space<vmem>>, vector<16x128xf32>
    tpu.vector_store %arg6[%c0_12, %c0_13], %15 {strides = array<i32>} : memref<16x128xf32, #tpu.memory_space<vmem>>, vector<16x128xf32>,
    %c15_i32 = arith.constant 15 : i32
    %17 = arith.cmpi eq, %arg0, %c15_i32 : i32
    %18 = arith.extui %17 : i1 to i32
    %c0_i32_14 = arith.constant 0 : i32
    %19 = arith.cmpi ne, %18, %c0_i32_14 : i32
    scf.if %19 {
      %c0_15 = arith.constant 0 : index
      %c0_16 = arith.constant 0 : index
      %20 = vector.load %arg5[%c0_15, %c0_16] : memref<16x128xf32, #tpu.memory_space<vmem>>, vector<16x128xf32>
      tpu.vector_store %arg5[%c0_15, %c0_16], %13 {strides = array<i32>} : memref<16x128xf32, #tpu.memory_space<vmem>>, vector<16x128xf32>,
    } else {
    }
    return
  }
  func.func @transform_0(%arg0: i32) -> (i32, i32) {
    %c0_i32 = arith.constant 0 : i32
    %c0_i32_0 = arith.constant 0 : i32
    %c0_i32_1 = arith.constant 0 : i32
    return %c0_i32, %c0_i32_0 : i32, i32
  }
  func.func @transform_1(%arg0: i32) -> (i32, i32) {
    %c0_i32 = arith.constant 0 : i32
    %c0_i32_0 = arith.constant 0 : i32
    %c0_i32_1 = arith.constant 0 : i32
    return %c0_i32, %c0_i32_0 : i32, i32
  }
  func.func @transform_2(%arg0: i32) -> (i32, i32, i32) {
    %c0_i32 = arith.constant 0 : i32
    %c0_i32_0 = arith.constant 0 : i32
    %c0_i32_1 = arith.constant 0 : i32
    return %arg0, %c0_i32, %c0_i32_0 : i32, i32, i32
  }
  func.func @transform_3(%arg0: i32) -> (i32, i32, i32) {
    %c0_i32 = arith.constant 0 : i32
    %c0_i32_0 = arith.constant 0 : i32
    %c0_i32_1 = arith.constant 0 : i32
    return %arg0, %c0_i32, %c0_i32_0 : i32, i32, i32
  }
  func.func @transform_4(%arg0: i32) -> (i32, i32) {
    %c0_i32 = arith.constant 0 : i32
    %c0_i32_0 = arith.constant 0 : i32
    %c0_i32_1 = arith.constant 0 : i32
    return %c0_i32, %c0_i32_0 : i32, i32
  }
}

</mosaic_0001>

<llo_original>
// kernel: gcn_layer_16_forward.1
$region0: #{gcn_layer_16_forward.1}
  #allocation0 [shape = 'u32[]', space=smem, size = 0x4, offset = 0x4, fixed_abs, tag = 'smem constant byte address 0x4 - core index']
  #allocation1 [shape = 'u32[144,128]{1,0:T(1,128)}', space=vmem, size = 0x12000, scoped, tag = 'internal scratch']
  #allocation2 [shape = 'f32[16,128]{1,0:T(8,128)}', space=vmem, size = 0x2000, scoped, tag = 'scratch operand']
  %s0 = inlined_call_operand.hbm [shape: f32[16,16], index: 0, kind: input, shape index: {}]
  %s1 = inlined_call_operand.hbm [shape: f32[16,16], index: 1, kind: input, shape index: {}]
  %s2 = inlined_call_operand.hbm [shape: bf16[16,128,128], index: 2, kind: input, shape index: {}]
  %s3 = inlined_call_operand.hbm [shape: f32[16,1,128], index: 3, kind: input, shape index: {}]
  %s4 = inlined_call_operand.hbm [shape: f32[16,128], index: 4, kind: output, shape index: {}]
  %s5 = sld [smem:[#allocation0]]
  $region73: #{gcn_layer_16_forward.1} parent=0
    _
  %s7 = ssub.s32 1, %s5
  %s8 = scalar_select 0, %s7, %s5
  $region1: #{gcn_layer_16_forward.1} parent=0
    #allocation3 [shape = 'u8[8192]{0}', space=vmem, size = 0x2000, scoped, tag = 'input window, operand 0, single buffered']
    #allocation4 [shape = 's32[2]{0}', space=sflag, size = 0x8, scoped, tag = 'scoped memory for gcn_layer_16_forward.1']
    #allocation5 [shape = 's32[2]{0}', space=sflag, size = 0x8, scoped, tag = 'scoped memory for gcn_layer_16_forward.1']
    #allocation6 [shape = 'u8[8192]{0}', space=vmem, size = 0x2000, scoped, tag = 'input window, operand 1, single buffered']
    #allocation7 [shape = 's32[1]{0}', space=sflag, size = 0x4, scoped, tag = 'scoped memory for gcn_layer_16_forward.1']
    #allocation8 [shape = 'u8[65536]{0}', space=vmem, size = 0x10000, scoped, tag = 'input window, operand 2']
    #allocation9 [shape = 'u8[1024]{0}', space=vmem, size = 0x400, scoped, tag = 'input window, operand 3']
    #allocation10 [shape = 'u8[8192]{0}', space=vmem, size = 0x2000, scoped, tag = 'output window, operand 0, single buffered']
    %9 = vsyncpa [#allocation4], 0
    %10 = vsyncpa [#allocation7], 0
    %11 = vsyncpa [#allocation5], 0
    loop: start=0, step=1, limit=18
    $region2: #{gcn_layer_16_forward.1} parent=1 // loop_pre_header
      _
    $region3: #{gcn_layer_16_forward.1} parent=1 // loop_header
      %s13 = sphi 0, %s17
      %p14 = scmp.ge.s32.totalorder %s13, 18
      %s21 = sphi 0, %s21
      %s23 = sphi 0, %s21
      %s24 = sphi 0, %s23
      %s38 = sphi 0, %s24
      %s42 = sphi 0, %s42
      %s44 = sphi 0, %s42
      %s45 = sphi 0, %s44
      %s59 = sphi 0, %s45
      %s65 = sphi 0, %s67
      %s68 = sphi 0, %s65
      %s69 = sphi 0, %s68
      %s85 = sphi 0, %s69
      %s91 = sphi 0, %s93
      %s94 = sphi 0, %s91
      %s95 = sphi 0, %s94
      %s111 = sphi 0, %s95
      %s115 = sphi 0, %s115
      %s117 = sphi 0, %s115
      %s118 = sphi 0, %s117
      %s132 = sphi 0, %s118
    $region4: #{gcn_layer_16_forward.1} parent=1 // loop_header_branch
      %16 = sbr.rel (%p14) target = $region8
    $region5: #{gcn_layer_16_forward.1} parent=1 // loop_body
      %s18 = ssub.s32 %s13, 1
      %s19 = ssub.s32 %s13, 2
      %s20 = sadd.s32 %s13, 1
      %s22 = sadd.s32 %s21, 1
      %p25 = scmp.eq.s32.totalorder %s13, 15
      %p26 = scmp.ne.s32.totalorder %s21, %s23
      %p27 = scmp.eq.s32.totalorder %s13, 0
      %p28 = por %p26, %p27
      %p29 = scmp.ne.s32.totalorder %s21, %s23
      %p30 = scmp.eq.s32.totalorder %s18, 15
      %p31 = por %p29, %p30
      %p32 = scmp.ne.s32.totalorder %s23, %s24
      %p33 = scmp.eq.s32.totalorder %s18, 0
      %p34 = por %p32, %p33
      %p35 = scmp.ne.s32.totalorder %s23, %s24
      %p36 = scmp.eq.s32.totalorder %s19, 15
      %p37 = por %p35, %p36
      %p39 = scmp.ne.s32.totalorder %s24, %s38
      %p40 = scmp.eq.s32.totalorder %s19, 0
      %p41 = por %p39, %p40
      %s43 = sadd.s32 %s42, 1
      %p46 = scmp.eq.s32.totalorder %s13, 15
      %p47 = scmp.ne.s32.totalorder %s42, %s44
      %p48 = scmp.eq.s32.totalorder %s13, 0
      %p49 = por %p47, %p48
      %p50 = scmp.ne.s32.totalorder %s42, %s44
      %p51 = scmp.eq.s32.totalorder %s18, 15
      %p52 = por %p50, %p51
      %p53 = scmp.ne.s32.totalorder %s44, %s45
      %p54 = scmp.eq.s32.totalorder %s18, 0
      %p55 = por %p53, %p54
      %p56 = scmp.ne.s32.totalorder %s44, %s45
      %p57 = scmp.eq.s32.totalorder %s19, 15
      %p58 = por %p56, %p57
      %p60 = scmp.ne.s32.totalorder %s45, %s59
      %p61 = scmp.eq.s32.totalorder %s19, 0
      %p62 = por %p60, %p61
      %s63 = ssub.s32 %s13, %s20
      %p64 = scmp.eq.s32.totalorder %s63, 0
      %s66 = sadd.s32 %s65, 1
      %s67 = scalar_select %p64, %s65, %s66
      %p70 = pneg %p64
      %p71 = scmp.eq.s32.totalorder %s13, 15
      %p72 = por %p70, %p71
      %p73 = scmp.ne.s32.totalorder %s65, %s68
      %p74 = scmp.eq.s32.totalorder %s13, 0
      %p75 = por %p73, %p74
      %p76 = scmp.ne.s32.totalorder %s65, %s68
      %p77 = scmp.eq.s32.totalorder %s18, 15
      %p78 = por %p76, %p77
      %p79 = scmp.ne.s32.totalorder %s68, %s69
      %p80 = scmp.eq.s32.totalorder %s18, 0
      %p81 = por %p79, %p80
      %p82 = scmp.ne.s32.totalorder %s68, %s69
      %p83 = scmp.eq.s32.totalorder %s19, 15
      %p84 = por %p82, %p83
      %p86 = scmp.ne.s32.totalorder %s69, %s85
      %p87 = scmp.eq.s32.totalorder %s19, 0
      %p88 = por %p86, %p87
      %s89 = ssub.s32 %s13, %s20
      %p90 = scmp.eq.s32.totalorder %s89, 0
      %s92 = sadd.s32 %s91, 1
      %s93 = scalar_select %p90, %s91, %s92
      %p96 = pneg %p90
      %p97 = scmp.eq.s32.totalorder %s13, 15
      %p98 = por %p96, %p97
      %p99 = scmp.ne.s32.totalorder %s91, %s94
      %p100 = scmp.eq.s32.totalorder %s13, 0
      %p101 = por %p99, %p100
      %p102 = scmp.ne.s32.totalorder %s91, %s94
      %p103 = scmp.eq.s32.totalorder %s18, 15
      %p104 = por %p102, %p103
      %p105 = scmp.ne.s32.totalorder %s94, %s95
      %p106 = scmp.eq.s32.totalorder %s18, 0
      %p107 = por %p105, %p106
      %p108 = scmp.ne.s32.totalorder %s94, %s95
      %p109 = scmp.eq.s32.totalorder %s19, 15
      %p110 = por %p108, %p109
      %p112 = scmp.ne.s32.totalorder %s95, %s111
      %p113 = scmp.eq.s32.totalorder %s19, 0
      %p114 = por %p112, %p113
      %s116 = sadd.s32 %s115, 1
      %p119 = scmp.eq.s32.totalorder %s13, 15
      %p120 = scmp.ne.s32.totalorder %s115, %s117
      %p121 = scmp.eq.s32.totalorder %s13, 0
      %p122 = por %p120, %p121
      %p123 = scmp.ne.s32.totalorder %s115, %s117
      %p124 = scmp.eq.s32.totalorder %s18, 15
      %p125 = por %p123, %p124
      %p126 = scmp.ne.s32.totalorder %s117, %s118
      %p127 = scmp.eq.s32.totalorder %s18, 0
      %p128 = por %p126, %p127
      %p129 = scmp.ne.s32.totalorder %s117, %s118
      %p130 = scmp.eq.s32.totalorder %s19, 15
      %p131 = por %p129, %p130
      %p133 = scmp.ne.s32.totalorder %s118, %s132
      %p134 = scmp.eq.s32.totalorder %s19, 0
      %p135 = por %p133, %p134
      %p136 = scmp.le.s32.totalorder 1, %s13
      %p137 = scmp.lt.s32.totalorder %s13, 17
      %p138 = pnand %p136, %p137
      %p139 = pneg %p138
      // Predicated region
      $region9: #{gcn_layer_16_forward.1} parent=5 // pred_check
        _
      $region10: #{gcn_layer_16_forward.1} parent=5 // pred_check_branch
        %141 = sbr.rel (%p138) target = $region12
      $region11: #{gcn_layer_16_forward.1} parent=5 // pred_region
        %s142 = ssub.s32 %s13, 1
        // Predicated region
        $region13: #{gcn_layer_16_forward.1} parent=11 // pred_check
          %p143 = pneg %p34
        $region14: #{gcn_layer_16_forward.1} parent=11 // pred_check_branch
          %145 = sbr.rel (%p143) target = $region16
        $region15: #{gcn_layer_16_forward.1} parent=11 // pred_region
          %s147 = ssub.s32 256, 256
          %148 = vsyncadd [#allocation4], %s147
          %s149 = sshll.u32 [#allocation3], 4
          %s150 = int_to_ptr.vmem [resolvable:$true] %s149
          %155 = dma.hbm_to_vmem [thread:$0]  %s0, 256, %s150, [#allocation4], 128, 128, 8
        $region16: #{gcn_layer_16_forward.1} parent=11 // pred_fallthru
          _
        // Predicated region
        $region17: #{gcn_layer_16_forward.1} parent=11 // pred_check
          %p156 = pneg %p55
        $region18: #{gcn_layer_16_forward.1} parent=11 // pred_check_branch
          %158 = sbr.rel (%p156) target = $region20
        $region19: #{gcn_layer_16_forward.1} parent=11 // pred_region
          %s160 = ssub.s32 256, 256
          %161 = vsyncadd [#allocation7], %s160
          %s162 = sshll.u32 [#allocation6], 4
          %s163 = int_to_ptr.vmem [resolvable:$true] %s162
          %168 = dma.hbm_to_vmem [thread:$0]  %s1, 256, %s163, [#allocation7], 128, 128, 8
        $region20: #{gcn_layer_16_forward.1} parent=11 // pred_fallthru
          _
      $region12: #{gcn_layer_16_forward.1} parent=5 // pred_fallthru
        _
      %p169 = scmp.lt.s32.totalorder %s13, 16
      // Predicated region
      $region21: #{gcn_layer_16_forward.1} parent=5 // pred_check
        %p170 = pneg %p169
      $region22: #{gcn_layer_16_forward.1} parent=5 // pred_check_branch
        %172 = sbr.rel (%p170) target = $region24
      $region23: #{gcn_layer_16_forward.1} parent=5 // pred_region
        // Predicated region
        $region25: #{gcn_layer_16_forward.1} parent=23 // pred_check
          %p173 = pneg %p75
        $region26: #{gcn_layer_16_forward.1} parent=23 // pred_check_branch
          %175 = sbr.rel (%p173) target = $region28
        $region27: #{gcn_layer_16_forward.1} parent=23 // pred_region
          %s176 = sand.u32 %s13, 1
          %s177 = scalar_lea.sflag [#allocation4], %s176
          %s178 = sand.u32 %s65, 1
          %s179 = smul.addr %s178, 64
          %s180 = scalar_lea.vmem [#allocation8], %s179
          %s182 = ssub.s32 1024, 1024
          %183 = vsyncadd %s177, %s182
          %s184 = smul.addr %s13, 16
          %s185 = smul.addr %s184, 64
          %s186 = scalar_lea.hbm %s2, %s185
          %s187 = sshll.u32 %s180, 4
          %s188 = int_to_ptr.vmem [resolvable:$true] %s187
          %193 = dma.hbm_to_vmem [thread:$0]  %s186, 1024, %s188, %s177, 64, 64, 4
        $region28: #{gcn_layer_16_forward.1} parent=23 // pred_fallthru
          _
        // Predicated region
        $region29: #{gcn_layer_16_forward.1} parent=23 // pred_check
          %p194 = pneg %p101
        $region30: #{gcn_layer_16_forward.1} parent=23 // pred_check_branch
          %196 = sbr.rel (%p194) target = $region32
        $region31: #{gcn_layer_16_forward.1} parent=23 // pred_region
          %s197 = sand.u32 %s13, 1
          %s198 = scalar_lea.sflag [#allocation4], %s197
          %s199 = sand.u32 %s91, 1
          %s200 = scalar_lea.vmem [#allocation9], %s199
          %s202 = ssub.s32 16, 16
          %203 = vsyncadd %s198, %s202
          %s204 = smul.addr %s13, 16
          %s205 = scalar_lea.hbm %s3, %s204
          %s207 = sshll.u32 %s200, 4
          %s208 = int_to_ptr.vmem [resolvable:$true] %s207
          %210 = dma.hbm_to_vmem [thread:$0]  %s205, 16, %s208, %s198
        $region32: #{gcn_layer_16_forward.1} parent=23 // pred_fallthru
          _
      $region24: #{gcn_layer_16_forward.1} parent=5 // pred_fallthru
        _
      %p211 = scmp.le.s32.totalorder 1, %s13
      %p212 = scmp.lt.s32.totalorder %s13, 17
      %p213 = pnand %p211, %p212
      %p214 = pneg %p213
      // Predicated region
      $region33: #{gcn_layer_16_forward.1} parent=5 // pred_check
        _
      $region34: #{gcn_layer_16_forward.1} parent=5 // pred_check_branch
        %216 = sbr.rel (%p213) target = $region36
      $region35: #{gcn_layer_16_forward.1} parent=5 // pred_region
        %s217 = ssub.s32 %s13, 1
        // Predicated region
        $region37: #{gcn_layer_16_forward.1} parent=35 // pred_check
          %p218 = pneg %p34
        $region38: #{gcn_layer_16_forward.1} parent=35 // pred_check_branch
          %220 = sbr.rel (%p218) target = $region40
        $region39: #{gcn_layer_16_forward.1} parent=35 // pred_region
          %221 = dma.done [#allocation4], 256
        $region40: #{gcn_layer_16_forward.1} parent=35 // pred_fallthru
          _
        // Predicated region
        $region41: #{gcn_layer_16_forward.1} parent=35 // pred_check
          %p222 = pneg %p55
        $region42: #{gcn_layer_16_forward.1} parent=35 // pred_check_branch
          %224 = sbr.rel (%p222) target = $region44
        $region43: #{gcn_layer_16_forward.1} parent=35 // pred_region
          %225 = dma.done [#allocation7], 256
        $region44: #{gcn_layer_16_forward.1} parent=35 // pred_fallthru
          _
        %s226 = sand.u32 %s18, 1
        %s227 = scalar_lea.sflag [#allocation4], %s226
        %s228 = sand.u32 %s68, 1
        %s229 = smul.addr %s228, 64
        %s230 = scalar_lea.vmem [#allocation8], %s229
        // Predicated region
        $region45: #{gcn_layer_16_forward.1} parent=35 // pred_check
          %p231 = pneg %p81
        $region46: #{gcn_layer_16_forward.1} parent=35 // pred_check_branch
          %233 = sbr.rel (%p231) target = $region48
        $region47: #{gcn_layer_16_forward.1} parent=35 // pred_region
          %234 = dma.done %s227, 1024
        $region48: #{gcn_layer_16_forward.1} parent=35 // pred_fallthru
          _
        %s235 = sand.u32 %s18, 1
        %s236 = scalar_lea.sflag [#allocation4], %s235
        %s237 = sand.u32 %s94, 1
        %s238 = scalar_lea.vmem [#allocation9], %s237
        // Predicated region
        $region49: #{gcn_layer_16_forward.1} parent=35 // pred_check
          %p239 = pneg %p107
        $region50: #{gcn_layer_16_forward.1} parent=35 // pred_check_branch
          %241 = sbr.rel (%p239) target = $region52
        $region51: #{gcn_layer_16_forward.1} parent=35 // pred_region
          %242 = dma.done %s236, 16
        $region52: #{gcn_layer_16_forward.1} parent=35 // pred_fallthru
          _
        %p243 = pneg %p34
        %p244 = pneg %p31
        %p245 = pneg %p55
        %p246 = pneg %p52
        %s247 = sand.u32 %s18, 1
        %s248 = scalar_lea.sflag [#allocation4], %s247
        %s249 = sand.u32 %s68, 1
        %s250 = smul.addr %s249, 64
        %s251 = scalar_lea.vmem [#allocation8], %s250
        %p252 = pneg %p81
        %p253 = pneg %p78
        %s254 = sand.u32 %s18, 1
        %s255 = scalar_lea.sflag [#allocation4], %s254
        %s256 = sand.u32 %s94, 1
        %s257 = scalar_lea.vmem [#allocation9], %s256
        %p258 = pneg %p107
        %p259 = pneg %p104
        %p260 = pneg %p128
        %p261 = pneg %p125
        %p263 = scmp.eq.s32.totalorder %s18, 0
        // Predicated region
        $region53: #{gcn_layer_16_forward.1} parent=35 // pred_check
          %p264 = pneg %p263
        $region54: #{gcn_layer_16_forward.1} parent=35 // pred_check_branch
          %266 = sbr.rel (%p264) target = $region56
        $region55: #{gcn_layer_16_forward.1} parent=35 // pred_region
          %267 = vst [vmem:[#allocation2] sm:$0xff] 0.0
          %268 = vst [vmem:[#allocation2 + $0x8] sm:$0xff] 0.0
          %v269 = vld [vmem:[#allocation3] sm:$0xff]
          %v270 = vld [vmem:[#allocation3 + $0x8] sm:$0xff]
          %vm271 = vcmask 130048
          %272 = vst.msk [vmem:[#allocation2] sm:$0xff] %vm271, %v269
          %273 = vst.msk [vmem:[#allocation2 + $0x8] sm:$0xff] %vm271, %v270
        $region56: #{gcn_layer_16_forward.1} parent=35 // pred_fallthru
          _
        %v274 = vld [vmem:[#allocation2] sm:$0xff]
        %v275 = vld [vmem:[#allocation2 + $0x8] sm:$0xff]
        %v276 = vpack.c.bf16 %v275, %v274
        %v277 = vld [vmem:[%s230] sm:$0xf]
        %v278 = vld [vmem:[%s230 + $0x4] sm:$0xf]
        %v279 = vld [vmem:[%s230 + $0x8] sm:$0xf]
        %v280 = vld [vmem:[%s230 + $0xc] sm:$0xf]
        %v281 = vld [vmem:[%s230 + $0x10] sm:$0xf]
        %v282 = vld [vmem:[%s230 + $0x14] sm:$0xf]
        %v283 = vld [vmem:[%s230 + $0x18] sm:$0xf]
        %v284 = vld [vmem:[%s230 + $0x1c] sm:$0xf]
        %v285 = vld [vmem:[%s230 + $0x20] sm:$0xf]
        %v286 = vld [vmem:[%s230 + $0x24] sm:$0xf]
        %v287 = vld [vmem:[%s230 + $0x28] sm:$0xf]
        %v288 = vld [vmem:[%s230 + $0x2c] sm:$0xf]
        %v289 = vld [vmem:[%s230 + $0x30] sm:$0xf]
        %v290 = vld [vmem:[%s230 + $0x34] sm:$0xf]
        %v291 = vld [vmem:[%s230 + $0x38] sm:$0xf]
        %v292 = vld [vmem:[%s230 + $0x3c] sm:$0xf]
        %v309 = vunpack.c.l.b16 %v277
        %v310 = vunpack.c.l.b16 %v278
        %v311 = vunpack.c.l.b16 %v279
        %v312 = vunpack.c.l.b16 %v280
        %v313 = vunpack.c.l.b16 %v281
        %v314 = vunpack.c.l.b16 %v282
        %v315 = vunpack.c.l.b16 %v283
        %v316 = vunpack.c.l.b16 %v284
        %v317 = vunpack.c.l.b16 %v285
        %v318 = vunpack.c.l.b16 %v286
        %v319 = vunpack.c.l.b16 %v287
        %v320 = vunpack.c.l.b16 %v288
        %v321 = vunpack.c.l.b16 %v289
        %v322 = vunpack.c.l.b16 %v290
        %v323 = vunpack.c.l.b16 %v291
        %v324 = vunpack.c.l.b16 %v292
        %v325 = vpack.c.b16 %v310, %v309
        %v326 = vpack.c.b16 %v312, %v311
        %v327 = vpack.c.b16 %v314, %v313
        %v328 = vpack.c.b16 %v316, %v315
        %v329 = vpack.c.b16 %v318, %v317
        %v330 = vpack.c.b16 %v320, %v319
        %v331 = vpack.c.b16 %v322, %v321
        %v332 = vpack.c.b16 %v324, %v323
        %341 = vmatprep.subr.bf16.mxu0 0
        %342 = vmatpush1.bf16.msra.mxu0 %v332
        %343 = vmatprep.subr.bf16.mxu0 0
        %344 = vmatpush1.bf16.msra.mxu0 %v331
        %345 = vmatprep.subr.bf16.mxu0 0
        %346 = vmatpush1.bf16.msra.mxu0 %v330
        %347 = vmatprep.subr.bf16.mxu0 0
        %348 = vmatpush1.bf16.msra.mxu0 %v329
        %349 = vmatprep.subr.bf16.mxu0 0
        %350 = vmatpush1.bf16.msra.mxu0 %v328
        %351 = vmatprep.subr.bf16.mxu0 0
        %352 = vmatpush1.bf16.msra.mxu0 %v327
        %353 = vmatprep.subr.bf16.mxu0 0
        %354 = vmatpush1.bf16.msra.mxu0 %v326
        %355 = vmatprep.subr.bf16.mxu0 0
        %356 = vmatpush1.bf16.msra.mxu0 %v325
        %357 = vmatprep.subr.bf16.mxu0 0
        %358 = vmatpush2.bf16.msra.mxu0 0
        %359 = vmatprep.subr.bf16.mxu0 0
        %360 = vmatpush2.bf16.msra.mxu0 0
        %361 = vmatprep.subr.bf16.mxu0 0
        %362 = vmatpush2.bf16.msra.mxu0 0
        %363 = vmatprep.subr.bf16.mxu0 0
        %364 = vmatpush2.bf16.msra.mxu0 0
        %365 = vmatprep.subr.bf16.mxu0 0
        %366 = vmatpush2.bf16.msra.mxu0 0
        %367 = vmatprep.subr.bf16.mxu0 0
        %368 = vmatpush2.bf16.msra.mxu0 0
        %369 = vmatprep.subr.bf16.mxu0 0
        %370 = vmatpush2.bf16.msra.mxu0 0
        %371 = vmatprep.subr.bf16.mxu0 0
        %372 = vmatpush2.bf16.msra.mxu0 0
        %373 = vmatprep.mubr.bf16.mxu0 0
        %374 = vmatmul.mubr.bf16.gmra.mxu0 %v276
        %v375 = vpop.f32.mrf.mxu0
        %v376 = vadd.f32 0.0, %v375
        %v377 = vpop.f32.mrf.mxu0
        %v378 = vpop.f32.mrf.mxu0
        %v379 = vadd.f32 0.0, %v378
        %v380 = vpop.f32.mrf.mxu0
        %381 = vdwg.mxu0
        %v382 = vld [vmem:[#allocation6] sm:$0xff]
        %v383 = vld [vmem:[#allocation6 + $0x8] sm:$0xff]
        %v384 = vld [vmem:[%s238] sm:$0x1]
        %v386 = vlaneseq
        %v387 = vshrl.u32 %v386, 7
        %v388 = vsub.s32 0, %v387
        %v389 = vrot.slane %v384, %v388
        %vm391 = vcmask 130048
        %v393 = vsel %vm391, %v382, 0
        %v396 = vsel %vm391, %v383, 0
        %398 = vmatprep.subr.mxu0 0.0
        %399 = vmatpush1.msra.mxu0 0.0
        %400 = vmatprep.subr.mxu0 0.0
        %401 = vmatpush1.msra.mxu0 0.0
        %402 = vmatprep.subr.mxu0 0.0
        %403 = vmatpush1.msra.mxu0 0.0
        %404 = vmatprep.subr.mxu0 0.0
        %405 = vmatpush1.msra.mxu0 0.0
        %406 = vmatprep.subr.mxu0 0.0
        %407 = vmatpush1.msra.mxu0 0.0
        %408 = vmatprep.subr.mxu0 0.0
        %409 = vmatpush1.msra.mxu0 0.0
        %410 = vmatprep.subr.mxu0 0.0
        %411 = vmatpush1.msra.mxu0 0.0
        %412 = vmatprep.subr.mxu0 0.0
        %413 = vmatpush1.msra.mxu0 0.0
        %414 = vmatprep.subr.mxu0 0.0
        %415 = vmatpush1.msra.mxu0 0.0
        %416 = vmatprep.subr.mxu0 0.0
        %417 = vmatpush1.msra.mxu0 0.0
        %418 = vmatprep.subr.mxu0 0.0
        %419 = vmatpush1.msra.mxu0 0.0
        %420 = vmatprep.subr.mxu0 0.0
        %421 = vmatpush1.msra.mxu0 0.0
        %422 = vmatprep.subr.mxu0 0.0
        %423 = vmatpush1.msra.mxu0 0.0
        %424 = vmatprep.subr.mxu0 0.0
        %425 = vmatpush1.msra.mxu0 0.0
        %426 = vmatprep.subr.mxu0 0.0
        %427 = vmatpush1.msra.mxu0 %v379
        %428 = vmatprep.subr.mxu0 0.0
        %429 = vmatpush1.msra.mxu0 %v376
        %430 = vmatprep.subr.mxu0 0.0
        %431 = vmatpush2.msra.mxu0 0.0
        %432 = vmatprep.subr.mxu0 0.0
        %433 = vmatpush2.msra.mxu0 0.0
        %434 = vmatprep.subr.mxu0 0.0
        %435 = vmatpush2.msra.mxu0 0.0
        %436 = vmatprep.subr.mxu0 0.0
        %437 = vmatpush2.msra.mxu0 0.0
        %438 = vmatprep.subr.mxu0 0.0
        %439 = vmatpush2.msra.mxu0 0.0
        %440 = vmatprep.subr.mxu0 0.0
        %441 = vmatpush2.msra.mxu0 0.0
        %442 = vmatprep.subr.mxu0 0.0
        %443 = vmatpush2.msra.mxu0 0.0
        %444 = vmatprep.subr.mxu0 0.0
        %445 = vmatpush2.msra.mxu0 0.0
        %446 = vmatprep.subr.mxu0 0.0
        %447 = vmatpush2.msra.mxu0 0.0
        %448 = vmatprep.subr.mxu0 0.0
        %449 = vmatpush2.msra.mxu0 0.0
        %450 = vmatprep.subr.mxu0 0.0
        %451 = vmatpush2.msra.mxu0 0.0
        %452 = vmatprep.subr.mxu0 0.0
        %453 = vmatpush2.msra.mxu0 0.0
        %454 = vmatprep.subr.mxu0 0.0
        %455 = vmatpush2.msra.mxu0 0.0
        %456 = vmatprep.subr.mxu0 0.0
        %457 = vmatpush2.msra.mxu0 0.0
        %458 = vmatprep.subr.mxu0 0.0
        %459 = vmatpush2.msra.mxu0 0.0
        %460 = vmatprep.subr.mxu0 0.0
        %461 = vmatpush2.msra.mxu0 0.0
        %462 = vmatprep.mubr.f32.mxu0 0.0
        %463 = vmatmul.mubr.f32.gmra.mxu0 %v393
        %v464 = vpop.f32.mrf.mxu0
        %v465 = vadd.f32 %v389, %v464
        %v466 = vpop.f32.mrf.mxu0
        %467 = vmatprep.mubr.f32.mxu0 0.0
        %468 = vmatmul.mubr.f32.gmra.mxu0 %v396
        %v469 = vpop.f32.mrf.mxu0
        %v470 = vadd.f32 %v389, %v469
        %v471 = vpop.f32.mrf.mxu0
        %472 = vdwg.mxu0
        %v473 = vmax.f32 %v465, 0.0
        %v474 = vmax.f32 %v470, 0.0
        %475 = vst [vmem:[#allocation2] sm:$0xff] %v473
        %476 = vst [vmem:[#allocation2 + $0x8] sm:$0xff] %v474
        %p477 = scmp.eq.s32.totalorder %s18, 15
        // Predicated region
        $region57: #{gcn_layer_16_forward.1} parent=35 // pred_check
          %p478 = pneg %p477
        $region58: #{gcn_layer_16_forward.1} parent=35 // pred_check_branch
          %480 = sbr.rel (%p478) target = $region60
        $region59: #{gcn_layer_16_forward.1} parent=35 // pred_region
          %481 = vst [vmem:[#allocation10] sm:$0xff] %v465
          %482 = vst [vmem:[#allocation10 + $0x8] sm:$0xff] %v470
        $region60: #{gcn_layer_16_forward.1} parent=35 // pred_fallthru
          _
        // Predicated region
        $region61: #{gcn_layer_16_forward.1} parent=35 // pred_check
          %p483 = pneg %p125
        $region62: #{gcn_layer_16_forward.1} parent=35 // pred_check_branch
          %485 = sbr.rel (%p483) target = $region64
        $region63: #{gcn_layer_16_forward.1} parent=35 // pred_region
          %s487 = ssub.s32 256, 256
          %488 = vsyncadd [#allocation5], %s487
          %s489 = sshll.u32 [#allocation10], 4
          %s490 = int_to_ptr.vmem [resolvable:$true] %s489
          %495 = dma.vmem_to_hbm [thread:$0]  %s490, 256, %s4, [#allocation5], 128, 128, 8
        $region64: #{gcn_layer_16_forward.1} parent=35 // pred_fallthru
          _
        // Predicated region
        $region65: #{gcn_layer_16_forward.1} parent=35 // pred_check
          %p496 = pneg %p125
        $region66: #{gcn_layer_16_forward.1} parent=35 // pred_check_branch
          %498 = sbr.rel (%p496) target = $region68
        $region67: #{gcn_layer_16_forward.1} parent=35 // pred_region
          %499 = dma.done [#allocation5], 256
        $region68: #{gcn_layer_16_forward.1} parent=35 // pred_fallthru
          _
      $region36: #{gcn_layer_16_forward.1} parent=5 // pred_fallthru
        _
      %p500 = scmp.le.s32.totalorder 2, %s13
      // Predicated region
      $region69: #{gcn_layer_16_forward.1} parent=5 // pred_check
        %p501 = pneg %p500
      $region70: #{gcn_layer_16_forward.1} parent=5 // pred_check_branch
        %503 = sbr.rel (%p501) target = $region72
      $region71: #{gcn_layer_16_forward.1} parent=5 // pred_region
        %s504 = ssub.s32 %s13, 2
      $region72: #{gcn_layer_16_forward.1} parent=5 // pred_fallthru
        _
    $region6: #{gcn_layer_16_forward.1} parent=1 // loop_footer
      %s17 = sadd.s32 1, %s13
    $region7: #{gcn_layer_16_forward.1} parent=1 // loop_footer_branch
      %12 = sbr.rel target = $region3
    $region8: #{gcn_layer_16_forward.1} parent=1 // loop_exit
      _
    %505 = vsyncpa [#allocation4], 1
    %s506 = scalar_lea.sflag [#allocation4], 1
    %507 = vsyncpa %s506, 1
    %508 = vsyncpa [#allocation7], 1
    %509 = vsyncpa [#allocation5], 1
    %s510 = scalar_lea.sflag [#allocation5], 1
    %511 = vsyncpa %s510, 1

</llo_original>
